<compile_context>
chip_gen: v5e
topology: v5e:2x2
jax: 0.10.0
libtpu: 0.0.40
codegen_flags: <defaults>
</compile_context>

<pallas_src>
import functools

import jax
import jax.numpy as jnp
from jax.experimental import pallas as pl
from jax.experimental.pallas import tpu as pltpu

_LANE = 128
_VMEM_BUDGET = 44 * 1024 * 1024          # v7x-safe (64 MiB physical per TensorCore)


def _round_up(x, m):
    return (x + m - 1) // m * m


def _cdiv(a, b):
    return (a + b - 1) // b


def _linear_kernel(x_ref, w_ref, b_ref, o_ref):
    # x_ref: (tm, K) native dtype, w_ref: (tn, K) bf16, b_ref: (1, tn) f32,
    # o_ref: (tm, tn). Single K block -> no accumulator scratch needed.
    x = x_ref[...].astype(jnp.bfloat16)          # in-kernel cast (VPU, hidden under DMA/MXU)
    acc = jax.lax.dot_general(
        x, w_ref[...],
        dimension_numbers=(((1,), (1,)), ((), ())),   # contract last dim of both operands
        preferred_element_type=jnp.float32)
    o_ref[...] = (acc + b_ref[...]).astype(o_ref.dtype)


def prepare_params(weight, bias):
    """One-time param prep (hoist out of the per-call path): pad to lane multiples
    and cast the weight to bf16. weight: (C, F), bias: (C,)."""
    C, F = weight.shape
    n_pad = _round_up(C, _LANE)
    k_pad = _round_up(F, _LANE)
    w_p = jnp.zeros((n_pad, k_pad), jnp.bfloat16).at[:C, :F].set(
        weight.astype(jnp.bfloat16))
    b_p = jnp.zeros((1, n_pad), jnp.float32).at[0, :C].set(
        bias.astype(jnp.float32))
    return w_p, b_p


def _pick_tm(B):
    if B < 64:
        return B                                  # single M block (block dim == full dim)
    # >= 2 M blocks so both v7x TensorCores get work; MXU/sublane friendly size.
    return min(256, _round_up(_cdiv(B, 2), 8))


def _vmem_estimate(tm, tn, k_pad, x_itemsize, out_itemsize):
    # Double-buffered inputs + output + bias.
    return (2 * tm * k_pad * x_itemsize
            + 2 * tn * k_pad * 2
            + 2 * tm * tn * out_itemsize
            + 2 * tn * 4)


def linear_forward(x, w_p, b_p, num_classes):
    """Pallas equivalent of: x.view(B, -1) @ weight.T + bias.
    `w_p`, `b_p` come from prepare_params (padded / pre-cast, prepared once)."""
    B = x.shape[0]
    x2d = x.reshape(B, -1)                        # glue: flatten, plain JAX
    F = x2d.shape[1]
    n_pad, k_pad = w_p.shape
    out_dtype = x2d.dtype
    x_itemsize = jnp.dtype(x2d.dtype).itemsize
    out_itemsize = jnp.dtype(out_dtype).itemsize

    # Pad ONLY a ragged K tail (weights were padded with zeros at prep time, so the
    # padded K region contributes nothing to the reduction). No-op when F % 128 == 0.
    if F != k_pad:
        x2d = jnp.pad(x2d, ((0, 0), (0, k_pad - F)))

    # Tile selection. K collapsed to one resident block (classifier-sized F);
    # lane-dense N tiles; tm sized for megacore occupancy & VMEM budget.
    # TODO(synk): for very large feature dims (K tiles > VMEM budget), reintroduce
    # K tiling with an f32 accumulator scratch.
    tn = 256 if n_pad % 256 == 0 else 128
    tm = _pick_tm(B)
    if tm % 8 == 0:
        while (_vmem_estimate(tm, tn, k_pad, x_itemsize, out_itemsize) > _VMEM_BUDGET
               and tm >= 16):
            tm = _round_up(tm // 2, 8)

    m_blocks = _cdiv(B, tm)
    n_blocks = n_pad // tn
    grid = (m_blocks, n_blocks)

    # Actual HBM traffic: x streamed once (its block index is constant over the inner
    # N axis), W re-read once per M block, bias tiny, output written once.
    cost = pl.CostEstimate(
        flops=2 * B * n_pad * k_pad,
        transcendentals=0,
        bytes_accessed=(B * k_pad * x_itemsize
                        + n_pad * k_pad * 2 * m_blocks
                        + n_pad * 4 * m_blocks
                        + B * n_pad * out_itemsize),
    )

    vmem_limit = min(_VMEM_BUDGET,
                     max(32 * 1024 * 1024,
                         int(1.25 * _vmem_estimate(tm, tn, k_pad, x_itemsize,
                                                   out_itemsize))))

    out = pl.pallas_call(
        _linear_kernel,
        out_shape=jax.ShapeDtypeStruct((B, n_pad), out_dtype),
        grid=grid,
        in_specs=[
            pl.BlockSpec((tm, k_pad), lambda i, j: (i, 0)),   # x: resident over N axis
            pl.BlockSpec((tn, k_pad), lambda i, j: (j, 0)),   # W in stored (C, F) layout
            pl.BlockSpec((1, tn), lambda i, j: (0, j)),       # bias
        ],
        out_specs=pl.BlockSpec((tm, tn), lambda i, j: (i, j)),
        compiler_params=pltpu.CompilerParams(
            dimension_semantics=("parallel", "parallel"),
            vmem_limit_bytes=vmem_limit,
        ),
        cost_estimate=cost,
    )(x2d, w_p, b_p)

    return out[:, :num_classes]


def init_params(key, feature_dim, num_classes=10, dtype=jnp.float32):
    # Deterministic init mimicking nn.Linear defaults (uniform(-1/sqrt(F), 1/sqrt(F))).
    kw, kb = jax.random.split(key)
    bound = 1.0 / jnp.sqrt(jnp.asarray(feature_dim, dtype))
    weight = jax.random.uniform(kw, (num_classes, feature_dim), dtype,
                                minval=-bound, maxval=bound)
    bias = jax.random.uniform(kb, (num_classes,), dtype,
                              minval=-bound, maxval=bound)
    return weight, bias


if __name__ == "__main__":
    key = jax.random.PRNGKey(0)
    k_x, k_p = jax.random.split(key)

    # Small example: batch=2, channels=4, spatial=16x16 -> feature_dim = 4*16*16 = 1024
    B, C_in, H, W = 2, 4, 16, 16
    feature_dim = C_in * H * W
    num_classes = 10

    x = jax.random.normal(k_x, (B, C_in, H, W), dtype=jnp.float32)
    weight, bias = init_params(k_p, feature_dim, num_classes)

    # One-time parameter prep (pad + bf16 cast), hoisted out of the forward path.
    w_p, b_p = prepare_params(weight, bias)

    fwd = jax.jit(functools.partial(linear_forward, num_classes=num_classes))
    y = fwd(x, w_p, b_p)
    jax.block_until_ready(y)

    # Sanity check vs plain-JAX f32 reference (bf16 MXU operands, f32 accumulation
    # -> relaxed tolerance).
    y_ref = x.reshape(B, -1) @ weight.T + bias
    assert y.shape == (B, num_classes)
    assert jnp.allclose(y, y_ref, atol=2e-2, rtol=2e-2)
    print("KERNEL_OK")
</pallas_src>

<mosaic_0001>
module attributes {stable_mosaic.version = 11 : i64} {
  func.func @_linear_kernel(%arg0: i32, %arg1: i32, %arg2: memref<2x1024xf32, #tpu.memory_space<vmem>>, %arg3: memref<128x1024xbf16, #tpu.memory_space<vmem>>, %arg4: memref<1x128xf32, #tpu.memory_space<vmem>>, %arg5: memref<2x128xf32, #tpu.memory_space<vmem>>) attributes {dimension_semantics = [#tpu.dimension_semantics<parallel>, #tpu.dimension_semantics<parallel>], iteration_bounds = array<i64: 1, 1>, scalar_prefetch = 0 : i64, scratch_operands = 0 : i64, tpu.core_type = #tpu.core_type<tc>, window_params = [{transform_indices = @transform_0, window_bounds = array<i64: 2, 1024>}, {transform_indices = @transform_1, window_bounds = array<i64: 128, 1024>}, {transform_indices = @transform_2, window_bounds = array<i64: 1, 128>}, {transform_indices = @transform_3, window_bounds = array<i64: 2, 128>}]} {
    %c0 = arith.constant 0 : index
    %c0_0 = arith.constant 0 : index
    %0 = vector.load %arg2[%c0, %c0_0] : memref<2x1024xf32, #tpu.memory_space<vmem>>, vector<2x1024xf32>
    %1 = arith.truncf %0 : vector<2x1024xf32> to vector<2x1024xbf16>
    %c0_1 = arith.constant 0 : index
    %c0_2 = arith.constant 0 : index
    %2 = vector.load %arg3[%c0_1, %c0_2] : memref<128x1024xbf16, #tpu.memory_space<vmem>>, vector<128x1024xbf16>
    %cst = arith.constant dense<0.000000e+00> : vector<2x128xf32>
    %3 = tpu.matmul %1, %2, %cst {dimension_numbers = #tpu.dot_dimension_numbers<[1], [1], [0], [0], [0, 0, 1, 0], [], []>} : vector<2x1024xbf16>, vector<128x1024xbf16>, vector<2x128xf32> -> vector<2x128xf32>
    %c0_3 = arith.constant 0 : index
    %c0_4 = arith.constant 0 : index
    %4 = vector.load %arg4[%c0_3, %c0_4] : memref<1x128xf32, #tpu.memory_space<vmem>>, vector<1x128xf32>
    %5 = vector.broadcast %4 : vector<1x128xf32> to vector<2x128xf32>
    %6 = arith.addf %3, %5 : vector<2x128xf32>
    %c0_5 = arith.constant 0 : index
    %c0_6 = arith.constant 0 : index
    %7 = vector.load %arg5[%c0_5, %c0_6] : memref<2x128xf32, #tpu.memory_space<vmem>>, vector<2x128xf32>
    tpu.vector_store %arg5[%c0_5, %c0_6], %6 {strides = array<i32>} : memref<2x128xf32, #tpu.memory_space<vmem>>, vector<2x128xf32>,
    return
  }
  func.func @transform_0(%arg0: i32, %arg1: i32) -> (i32, i32) {
    %c0_i32 = arith.constant 0 : i32
    %c0_i32_0 = arith.constant 0 : i32
    return %arg0, %c0_i32 : i32, i32
  }
  func.func @transform_1(%arg0: i32, %arg1: i32) -> (i32, i32) {
    %c0_i32 = arith.constant 0 : i32
    %c0_i32_0 = arith.constant 0 : i32
    return %arg1, %c0_i32 : i32, i32
  }
  func.func @transform_2(%arg0: i32, %arg1: i32) -> (i32, i32) {
    %c0_i32 = arith.constant 0 : i32
    %c0_i32_0 = arith.constant 0 : i32
    return %c0_i32, %arg1 : i32, i32
  }
  func.func @transform_3(%arg0: i32, %arg1: i32) -> (i32, i32) {
    %c0_i32 = arith.constant 0 : i32
    return %arg0, %arg1 : i32, i32
  }
}

</mosaic_0001>

<llo_original>
// kernel: linear_forward.1
$region0: #{linear_forward.1}
  #allocation0 [shape = 'u32[]', space=smem, size = 0x4, offset = 0x4, fixed_abs, tag = 'smem constant byte address 0x4 - core index']
  #allocation1 [shape = 'u32[72,128]{1,0:T(1,128)}', space=vmem, size = 0x9000, scoped, tag = 'internal scratch']
  %s0 = inlined_call_operand.vmem [shape: f32[2,1024], index: 0, kind: input, shape index: {}]
  %s1 = inlined_call_operand.hbm [shape: bf16[128,1024], index: 1, kind: input, shape index: {}]
  %s2 = inlined_call_operand.vmem [shape: f32[1,128], index: 2, kind: input, shape index: {}]
  %s3 = inlined_call_operand.hbm [shape: f32[2,128], index: 3, kind: output, shape index: {}]
  %s4 = sld [smem:[#allocation0]]
  $region26: #{linear_forward.1} parent=0
    _
  %s6 = ssub.s32 1, %s4
  %s7 = scalar_select 0, %s6, %s4
  $region1: #{linear_forward.1} parent=0
    #allocation2 [shape = 'u8[262144]{0}', space=vmem, size = 0x40000, scoped, tag = 'input window, operand 1, single buffered']
    #allocation3 [shape = 's32[1]{0}', space=sflag, size = 0x4, scoped, tag = 'scoped memory for linear_forward.1']
    #allocation4 [shape = 's32[1]{0}', space=sflag, size = 0x4, scoped, tag = 'scoped memory for linear_forward.1']
    #allocation5 [shape = 'u8[1024]{0}', space=vmem, size = 0x400, scoped, tag = 'output window, operand 0, single buffered']
    %8 = vsyncpa [#allocation3], 0
    %9 = vsyncpa [#allocation4], 0
    // Predicated region
    $region2: #{linear_forward.1} parent=1 // pred_check
      _
    $region3: #{linear_forward.1} parent=1 // pred_check_branch
      %11 = sbr.rel (0) target = $region5
    $region4: #{linear_forward.1} parent=1 // pred_region
      _
    $region5: #{linear_forward.1} parent=1 // pred_fallthru
      _
    // Predicated region
    $region6: #{linear_forward.1} parent=1 // pred_check
      _
    $region7: #{linear_forward.1} parent=1 // pred_check_branch
      %13 = sbr.rel (0) target = $region9
    $region8: #{linear_forward.1} parent=1 // pred_region
      %15 = vsyncadd [#allocation3], 0
      %s16 = sshll.u32 %s1, 4
      %s17 = int_to_ptr.hbm [resolvable:$true] %s16
      %s18 = sshll.u32 [#allocation2], 4
      %s19 = int_to_ptr.vmem [resolvable:$true] %s18
      %24 = dma.hbm_to_vmem [thread:$0]  %s17, 8192, %s19, [#allocation3], 512, 512, 32
    $region9: #{linear_forward.1} parent=1 // pred_fallthru
      _
    // Predicated region
    $region10: #{linear_forward.1} parent=1 // pred_check
      _
    $region11: #{linear_forward.1} parent=1 // pred_check_branch
      %26 = sbr.rel (0) target = $region13
    $region12: #{linear_forward.1} parent=1 // pred_region
      _
    $region13: #{linear_forward.1} parent=1 // pred_fallthru
      _
    // Predicated region
    $region14: #{linear_forward.1} parent=1 // pred_check
      _
    $region15: #{linear_forward.1} parent=1 // pred_check_branch
      %28 = sbr.rel (0) target = $region17
    $region16: #{linear_forward.1} parent=1 // pred_region
      %30 = dma.done [#allocation3], 8192
    $region17: #{linear_forward.1} parent=1 // pred_fallthru
      _
    %v31 = vld [vmem:[%s0] sm:$0xff]
    %v32 = vld [vmem:[%s0 + $0x8] sm:$0xff]
    %35 = vst [vmem:[#allocation1] ss:$4 sm:$0xff] %v31
    %s36 = scalar_lea.vmem [#allocation1], 32
    %37 = vst [vmem:[%s36] ss:$4 sm:$0xff] %v32
    %v38 = vld.sshfl [vmem:[#allocation1] sm:$0xff pattern:$0x73625140]
    %v39 = vld.sshfl [vmem:[#allocation1 + $0x8] sm:$0xff pattern:$0x73625140]
    %v40 = vld.sshfl [vmem:[#allocation1 + $0x10] sm:$0xff pattern:$0x73625140]
    %v41 = vld.sshfl [vmem:[#allocation1 + $0x18] sm:$0xff pattern:$0x73625140]
    %v42 = vld.sshfl [vmem:[#allocation1 + $0x20] sm:$0xff pattern:$0x73625140]
    %v43 = vld.sshfl [vmem:[#allocation1 + $0x28] sm:$0xff pattern:$0x73625140]
    %v44 = vld.sshfl [vmem:[#allocation1 + $0x30] sm:$0xff pattern:$0x73625140]
    %v45 = vld.sshfl [vmem:[#allocation1 + $0x38] sm:$0xff pattern:$0x73625140]
    %v54 = vpack.c.bf16 %v38, %v38
    %v55 = vpack.c.bf16 %v39, %v39
    %v56 = vpack.c.bf16 %v40, %v40
    %v57 = vpack.c.bf16 %v41, %v41
    %v58 = vpack.c.bf16 %v42, %v42
    %v59 = vpack.c.bf16 %v43, %v43
    %v60 = vpack.c.bf16 %v44, %v44
    %v61 = vpack.c.bf16 %v45, %v45
    %v62 = vld [vmem:[#allocation2] sm:$0xff]
    %v63 = vld [vmem:[#allocation2 + $0x8] sm:$0xff]
    %v64 = vld [vmem:[#allocation2 + $0x10] sm:$0xff]
    %v65 = vld [vmem:[#allocation2 + $0x18] sm:$0xff]
    %v66 = vld [vmem:[#allocation2 + $0x20] sm:$0xff]
    %v67 = vld [vmem:[#allocation2 + $0x28] sm:$0xff]
    %v68 = vld [vmem:[#allocation2 + $0x30] sm:$0xff]
    %v69 = vld [vmem:[#allocation2 + $0x38] sm:$0xff]
    %v70 = vld [vmem:[#allocation2 + $0x40] sm:$0xff]
    %v71 = vld [vmem:[#allocation2 + $0x48] sm:$0xff]
    %v72 = vld [vmem:[#allocation2 + $0x50] sm:$0xff]
    %v73 = vld [vmem:[#allocation2 + $0x58] sm:$0xff]
    %v74 = vld [vmem:[#allocation2 + $0x60] sm:$0xff]
    %v75 = vld [vmem:[#allocation2 + $0x68] sm:$0xff]
    %v76 = vld [vmem:[#allocation2 + $0x70] sm:$0xff]
    %v77 = vld [vmem:[#allocation2 + $0x78] sm:$0xff]
    %v78 = vld [vmem:[#allocation2 + $0x80] sm:$0xff]
    %v79 = vld [vmem:[#allocation2 + $0x88] sm:$0xff]
    %v80 = vld [vmem:[#allocation2 + $0x90] sm:$0xff]
    %v81 = vld [vmem:[#allocation2 + $0x98] sm:$0xff]
    %v82 = vld [vmem:[#allocation2 + $0xa0] sm:$0xff]
    %v83 = vld [vmem:[#allocation2 + $0xa8] sm:$0xff]
    %v84 = vld [vmem:[#allocation2 + $0xb0] sm:$0xff]
    %v85 = vld [vmem:[#allocation2 + $0xb8] sm:$0xff]
    %v86 = vld [vmem:[#allocation2 + $0xc0] sm:$0xff]
    %v87 = vld [vmem:[#allocation2 + $0xc8] sm:$0xff]
    %v88 = vld [vmem:[#allocation2 + $0xd0] sm:$0xff]
    %v89 = vld [vmem:[#allocation2 + $0xd8] sm:$0xff]
    %v90 = vld [vmem:[#allocation2 + $0xe0] sm:$0xff]
    %v91 = vld [vmem:[#allocation2 + $0xe8] sm:$0xff]
    %v92 = vld [vmem:[#allocation2 + $0xf0] sm:$0xff]
    %v93 = vld [vmem:[#allocation2 + $0xf8] sm:$0xff]
    %v94 = vld [vmem:[#allocation2 + $0x100] sm:$0xff]
    %v95 = vld [vmem:[#allocation2 + $0x108] sm:$0xff]
    %v96 = vld [vmem:[#allocation2 + $0x110] sm:$0xff]
    %v97 = vld [vmem:[#allocation2 + $0x118] sm:$0xff]
    %v98 = vld [vmem:[#allocation2 + $0x120] sm:$0xff]
    %v99 = vld [vmem:[#allocation2 + $0x128] sm:$0xff]
    %v100 = vld [vmem:[#allocation2 + $0x130] sm:$0xff]
    %v101 = vld [vmem:[#allocation2 + $0x138] sm:$0xff]
    %v102 = vld [vmem:[#allocation2 + $0x140] sm:$0xff]
    %v103 = vld [vmem:[#allocation2 + $0x148] sm:$0xff]
    %v104 = vld [vmem:[#allocation2 + $0x150] sm:$0xff]
    %v105 = vld [vmem:[#allocation2 + $0x158] sm:$0xff]
    %v106 = vld [vmem:[#allocation2 + $0x160] sm:$0xff]
    %v107 = vld [vmem:[#allocation2 + $0x168] sm:$0xff]
    %v108 = vld [vmem:[#allocation2 + $0x170] sm:$0xff]
    %v109 = vld [vmem:[#allocation2 + $0x178] sm:$0xff]
    %v110 = vld [vmem:[#allocation2 + $0x180] sm:$0xff]
    %v111 = vld [vmem:[#allocation2 + $0x188] sm:$0xff]
    %v112 = vld [vmem:[#allocation2 + $0x190] sm:$0xff]
    %v113 = vld [vmem:[#allocation2 + $0x198] sm:$0xff]
    %v114 = vld [vmem:[#allocation2 + $0x1a0] sm:$0xff]
    %v115 = vld [vmem:[#allocation2 + $0x1a8] sm:$0xff]
    %v116 = vld [vmem:[#allocation2 + $0x1b0] sm:$0xff]
    %v117 = vld [vmem:[#allocation2 + $0x1b8] sm:$0xff]
    %v118 = vld [vmem:[#allocation2 + $0x1c0] sm:$0xff]
    %v119 = vld [vmem:[#allocation2 + $0x1c8] sm:$0xff]
    %v120 = vld [vmem:[#allocation2 + $0x1d0] sm:$0xff]
    %v121 = vld [vmem:[#allocation2 + $0x1d8] sm:$0xff]
    %v122 = vld [vmem:[#allocation2 + $0x1e0] sm:$0xff]
    %v123 = vld [vmem:[#allocation2 + $0x1e8] sm:$0xff]
    %v124 = vld [vmem:[#allocation2 + $0x1f0] sm:$0xff]
    %v125 = vld [vmem:[#allocation2 + $0x1f8] sm:$0xff]
    %v126 = vld [vmem:[%s2] sm:$0x1]
    %v128 = vperm.slane %v126, 0
    %v194 = vunpack.c.l.b16 %v62
    %v195 = vunpack.c.h.b16 %v62
    %v196 = vunpack.c.l.b16 %v63
    %v197 = vunpack.c.h.b16 %v63
    %v198 = vunpack.c.l.b16 %v64
    %v199 = vunpack.c.h.b16 %v64
    %v200 = vunpack.c.l.b16 %v65
    %v201 = vunpack.c.h.b16 %v65
    %v202 = vunpack.c.l.b16 %v66
    %v203 = vunpack.c.h.b16 %v66
    %v204 = vunpack.c.l.b16 %v67
    %v205 = vunpack.c.h.b16 %v67
    %v206 = vunpack.c.l.b16 %v68
    %v207 = vunpack.c.h.b16 %v68
    %v208 = vunpack.c.l.b16 %v69
    %v209 = vunpack.c.h.b16 %v69
    %v210 = vunpack.c.l.b16 %v70
    %v211 = vunpack.c.h.b16 %v70
    %v212 = vunpack.c.l.b16 %v71
    %v213 = vunpack.c.h.b16 %v71
    %v214 = vunpack.c.l.b16 %v72
    %v215 = vunpack.c.h.b16 %v72
    %v216 = vunpack.c.l.b16 %v73
    %v217 = vunpack.c.h.b16 %v73
    %v218 = vunpack.c.l.b16 %v74
    %v219 = vunpack.c.h.b16 %v74
    %v220 = vunpack.c.l.b16 %v75
    %v221 = vunpack.c.h.b16 %v75
    %v222 = vunpack.c.l.b16 %v76
    %v223 = vunpack.c.h.b16 %v76
    %v224 = vunpack.c.l.b16 %v77
    %v225 = vunpack.c.h.b16 %v77
    %v226 = vunpack.c.l.b16 %v78
    %v227 = vunpack.c.h.b16 %v78
    %v228 = vunpack.c.l.b16 %v79
    %v229 = vunpack.c.h.b16 %v79
    %v230 = vunpack.c.l.b16 %v80
    %v231 = vunpack.c.h.b16 %v80
    %v232 = vunpack.c.l.b16 %v81
    %v233 = vunpack.c.h.b16 %v81
    %v234 = vunpack.c.l.b16 %v82
    %v235 = vunpack.c.h.b16 %v82
    %v236 = vunpack.c.l.b16 %v83
    %v237 = vunpack.c.h.b16 %v83
    %v238 = vunpack.c.l.b16 %v84
    %v239 = vunpack.c.h.b16 %v84
    %v240 = vunpack.c.l.b16 %v85
    %v241 = vunpack.c.h.b16 %v85
    %v242 = vunpack.c.l.b16 %v86
    %v243 = vunpack.c.h.b16 %v86
    %v244 = vunpack.c.l.b16 %v87
    %v245 = vunpack.c.h.b16 %v87
    %v246 = vunpack.c.l.b16 %v88
    %v247 = vunpack.c.h.b16 %v88
    %v248 = vunpack.c.l.b16 %v89
    %v249 = vunpack.c.h.b16 %v89
    %v250 = vunpack.c.l.b16 %v90
    %v251 = vunpack.c.h.b16 %v90
    %v252 = vunpack.c.l.b16 %v91
    %v253 = vunpack.c.h.b16 %v91
    %v254 = vunpack.c.l.b16 %v92
    %v255 = vunpack.c.h.b16 %v92
    %v256 = vunpack.c.l.b16 %v93
    %v257 = vunpack.c.h.b16 %v93
    %v258 = vunpack.c.l.b16 %v94
    %v259 = vunpack.c.h.b16 %v94
    %v260 = vunpack.c.l.b16 %v95
    %v261 = vunpack.c.h.b16 %v95
    %v262 = vunpack.c.l.b16 %v96
    %v263 = vunpack.c.h.b16 %v96
    %v264 = vunpack.c.l.b16 %v97
    %v265 = vunpack.c.h.b16 %v97
    %v266 = vunpack.c.l.b16 %v98
    %v267 = vunpack.c.h.b16 %v98
    %v268 = vunpack.c.l.b16 %v99
    %v269 = vunpack.c.h.b16 %v99
    %v270 = vunpack.c.l.b16 %v100
    %v271 = vunpack.c.h.b16 %v100
    %v272 = vunpack.c.l.b16 %v101
    %v273 = vunpack.c.h.b16 %v101
    %v274 = vunpack.c.l.b16 %v102
    %v275 = vunpack.c.h.b16 %v102
    %v276 = vunpack.c.l.b16 %v103
    %v277 = vunpack.c.h.b16 %v103
    %v278 = vunpack.c.l.b16 %v104
    %v279 = vunpack.c.h.b16 %v104
    %v280 = vunpack.c.l.b16 %v105
    %v281 = vunpack.c.h.b16 %v105
    %v282 = vunpack.c.l.b16 %v106
    %v283 = vunpack.c.h.b16 %v106
    %v284 = vunpack.c.l.b16 %v107
    %v285 = vunpack.c.h.b16 %v107
    %v286 = vunpack.c.l.b16 %v108
    %v287 = vunpack.c.h.b16 %v108
    %v288 = vunpack.c.l.b16 %v109
    %v289 = vunpack.c.h.b16 %v109
    %v290 = vunpack.c.l.b16 %v110
    %v291 = vunpack.c.h.b16 %v110
    %v292 = vunpack.c.l.b16 %v111
    %v293 = vunpack.c.h.b16 %v111
    %v294 = vunpack.c.l.b16 %v112
    %v295 = vunpack.c.h.b16 %v112
    %v296 = vunpack.c.l.b16 %v113
    %v297 = vunpack.c.h.b16 %v113
    %v298 = vunpack.c.l.b16 %v114
    %v299 = vunpack.c.h.b16 %v114
    %v300 = vunpack.c.l.b16 %v115
    %v301 = vunpack.c.h.b16 %v115
    %v302 = vunpack.c.l.b16 %v116
    %v303 = vunpack.c.h.b16 %v116
    %v304 = vunpack.c.l.b16 %v117
    %v305 = vunpack.c.h.b16 %v117
    %v306 = vunpack.c.l.b16 %v118
    %v307 = vunpack.c.h.b16 %v118
    %v308 = vunpack.c.l.b16 %v119
    %v309 = vunpack.c.h.b16 %v119
    %v310 = vunpack.c.l.b16 %v120
    %v311 = vunpack.c.h.b16 %v120
    %v312 = vunpack.c.l.b16 %v121
    %v313 = vunpack.c.h.b16 %v121
    %v314 = vunpack.c.l.b16 %v122
    %v315 = vunpack.c.h.b16 %v122
    %v316 = vunpack.c.l.b16 %v123
    %v317 = vunpack.c.h.b16 %v123
    %v318 = vunpack.c.l.b16 %v124
    %v319 = vunpack.c.h.b16 %v124
    %v320 = vunpack.c.l.b16 %v125
    %v321 = vunpack.c.h.b16 %v125
    %v322 = vpack.c.b16 %v202, %v194
    %v323 = vpack.c.b16 %v203, %v195
    %v324 = vpack.c.b16 %v204, %v196
    %v325 = vpack.c.b16 %v205, %v197
    %v326 = vpack.c.b16 %v206, %v198
    %v327 = vpack.c.b16 %v207, %v199
    %v328 = vpack.c.b16 %v208, %v200
    %v329 = vpack.c.b16 %v209, %v201
    %v330 = vpack.c.b16 %v218, %v210
    %v331 = vpack.c.b16 %v219, %v211
    %v332 = vpack.c.b16 %v220, %v212
    %v333 = vpack.c.b16 %v221, %v213
    %v334 = vpack.c.b16 %v222, %v214
    %v335 = vpack.c.b16 %v223, %v215
    %v336 = vpack.c.b16 %v224, %v216
    %v337 = vpack.c.b16 %v225, %v217
    %v338 = vpack.c.b16 %v234, %v226
    %v339 = vpack.c.b16 %v235, %v227
    %v340 = vpack.c.b16 %v236, %v228
    %v341 = vpack.c.b16 %v237, %v229
    %v342 = vpack.c.b16 %v238, %v230
    %v343 = vpack.c.b16 %v239, %v231
    %v344 = vpack.c.b16 %v240, %v232
    %v345 = vpack.c.b16 %v241, %v233
    %v346 = vpack.c.b16 %v250, %v242
    %v347 = vpack.c.b16 %v251, %v243
    %v348 = vpack.c.b16 %v252, %v244
    %v349 = vpack.c.b16 %v253, %v245
    %v350 = vpack.c.b16 %v254, %v246
    %v351 = vpack.c.b16 %v255, %v247
    %v352 = vpack.c.b16 %v256, %v248
    %v353 = vpack.c.b16 %v257, %v249
    %v354 = vpack.c.b16 %v266, %v258
    %v355 = vpack.c.b16 %v267, %v259
    %v356 = vpack.c.b16 %v268, %v260
    %v357 = vpack.c.b16 %v269, %v261
    %v358 = vpack.c.b16 %v270, %v262
    %v359 = vpack.c.b16 %v271, %v263
    %v360 = vpack.c.b16 %v272, %v264
    %v361 = vpack.c.b16 %v273, %v265
    %v362 = vpack.c.b16 %v282, %v274
    %v363 = vpack.c.b16 %v283, %v275
    %v364 = vpack.c.b16 %v284, %v276
    %v365 = vpack.c.b16 %v285, %v277
    %v366 = vpack.c.b16 %v286, %v278
    %v367 = vpack.c.b16 %v287, %v279
    %v368 = vpack.c.b16 %v288, %v280
    %v369 = vpack.c.b16 %v289, %v281
    %v370 = vpack.c.b16 %v298, %v290
    %v371 = vpack.c.b16 %v299, %v291
    %v372 = vpack.c.b16 %v300, %v292
    %v373 = vpack.c.b16 %v301, %v293
    %v374 = vpack.c.b16 %v302, %v294
    %v375 = vpack.c.b16 %v303, %v295
    %v376 = vpack.c.b16 %v304, %v296
    %v377 = vpack.c.b16 %v305, %v297
    %v378 = vpack.c.b16 %v314, %v306
    %v379 = vpack.c.b16 %v315, %v307
    %v380 = vpack.c.b16 %v316, %v308
    %v381 = vpack.c.b16 %v317, %v309
    %v382 = vpack.c.b16 %v318, %v310
    %v383 = vpack.c.b16 %v319, %v311
    %v384 = vpack.c.b16 %v320, %v312
    %v385 = vpack.c.b16 %v321, %v313
    %450 = vmatpush.bf16.xpose.msra.mxu0 %v378
    %451 = vmatpush.bf16.xpose.msra.mxu0 %v370
    %452 = vmatpush.bf16.xpose.msra.mxu0 %v362
    %453 = vmatpush.bf16.xpose.msra.mxu0 %v354
    %454 = vmatpush.bf16.xpose.msra.mxu0 %v346
    %455 = vmatpush.bf16.xpose.msra.mxu0 %v338
    %456 = vmatpush.bf16.xpose.msra.mxu0 %v330
    %457 = vmatpush.bf16.xpose.msra.mxu0 %v322
    %458 = vmatmul.bf16.gmra.mxu0 %v54
    %v459 = vpop.f32.mrf.mxu0
    %v460 = vadd.f32 %v128, %v459
    %v461 = vpop.f32.mrf.mxu0
    %462 = vdwg.mxu0
    %463 = vmatpush.bf16.xpose.msra.mxu0 %v379
    %464 = vmatpush.bf16.xpose.msra.mxu0 %v371
    %465 = vmatpush.bf16.xpose.msra.mxu0 %v363
    %466 = vmatpush.bf16.xpose.msra.mxu0 %v355
    %467 = vmatpush.bf16.xpose.msra.mxu0 %v347
    %468 = vmatpush.bf16.xpose.msra.mxu0 %v339
    %469 = vmatpush.bf16.xpose.msra.mxu0 %v331
    %470 = vmatpush.bf16.xpose.msra.mxu0 %v323
    %471 = vmatmul.bf16.gmra.mxu0 %v55
    %v472 = vpop.f32.mrf.mxu0
    %v473 = vadd.f32 %v460, %v472
    %v474 = vpop.f32.mrf.mxu0
    %475 = vdwg.mxu0
    %476 = vmatpush.bf16.xpose.msra.mxu0 %v380
    %477 = vmatpush.bf16.xpose.msra.mxu0 %v372
    %478 = vmatpush.bf16.xpose.msra.mxu0 %v364
    %479 = vmatpush.bf16.xpose.msra.mxu0 %v356
    %480 = vmatpush.bf16.xpose.msra.mxu0 %v348
    %481 = vmatpush.bf16.xpose.msra.mxu0 %v340
    %482 = vmatpush.bf16.xpose.msra.mxu0 %v332
    %483 = vmatpush.bf16.xpose.msra.mxu0 %v324
    %484 = vmatmul.bf16.gmra.mxu0 %v56
    %v485 = vpop.f32.mrf.mxu0
    %v486 = vadd.f32 %v473, %v485
    %v487 = vpop.f32.mrf.mxu0
    %488 = vdwg.mxu0
    %489 = vmatpush.bf16.xpose.msra.mxu0 %v381
    %490 = vmatpush.bf16.xpose.msra.mxu0 %v373
    %491 = vmatpush.bf16.xpose.msra.mxu0 %v365
    %492 = vmatpush.bf16.xpose.msra.mxu0 %v357
    %493 = vmatpush.bf16.xpose.msra.mxu0 %v349
    %494 = vmatpush.bf16.xpose.msra.mxu0 %v341
    %495 = vmatpush.bf16.xpose.msra.mxu0 %v333
    %496 = vmatpush.bf16.xpose.msra.mxu0 %v325
    %497 = vmatmul.bf16.gmra.mxu0 %v57
    %v498 = vpop.f32.mrf.mxu0
    %v499 = vadd.f32 %v486, %v498
    %v500 = vpop.f32.mrf.mxu0
    %501 = vdwg.mxu0
    %502 = vmatpush.bf16.xpose.msra.mxu0 %v382
    %503 = vmatpush.bf16.xpose.msra.mxu0 %v374
    %504 = vmatpush.bf16.xpose.msra.mxu0 %v366
    %505 = vmatpush.bf16.xpose.msra.mxu0 %v358
    %506 = vmatpush.bf16.xpose.msra.mxu0 %v350
    %507 = vmatpush.bf16.xpose.msra.mxu0 %v342
    %508 = vmatpush.bf16.xpose.msra.mxu0 %v334
    %509 = vmatpush.bf16.xpose.msra.mxu0 %v326
    %510 = vmatmul.bf16.gmra.mxu0 %v58
    %v511 = vpop.f32.mrf.mxu0
    %v512 = vadd.f32 %v499, %v511
    %v513 = vpop.f32.mrf.mxu0
    %514 = vdwg.mxu0
    %515 = vmatpush.bf16.xpose.msra.mxu0 %v383
    %516 = vmatpush.bf16.xpose.msra.mxu0 %v375
    %517 = vmatpush.bf16.xpose.msra.mxu0 %v367
    %518 = vmatpush.bf16.xpose.msra.mxu0 %v359
    %519 = vmatpush.bf16.xpose.msra.mxu0 %v351
    %520 = vmatpush.bf16.xpose.msra.mxu0 %v343
    %521 = vmatpush.bf16.xpose.msra.mxu0 %v335
    %522 = vmatpush.bf16.xpose.msra.mxu0 %v327
    %523 = vmatmul.bf16.gmra.mxu0 %v59
    %v524 = vpop.f32.mrf.mxu0
    %v525 = vadd.f32 %v512, %v524
    %v526 = vpop.f32.mrf.mxu0
    %527 = vdwg.mxu0
    %528 = vmatpush.bf16.xpose.msra.mxu0 %v384
    %529 = vmatpush.bf16.xpose.msra.mxu0 %v376
    %530 = vmatpush.bf16.xpose.msra.mxu0 %v368
    %531 = vmatpush.bf16.xpose.msra.mxu0 %v360
    %532 = vmatpush.bf16.xpose.msra.mxu0 %v352
    %533 = vmatpush.bf16.xpose.msra.mxu0 %v344
    %534 = vmatpush.bf16.xpose.msra.mxu0 %v336
    %535 = vmatpush.bf16.xpose.msra.mxu0 %v328
    %536 = vmatmul.bf16.gmra.mxu0 %v60
    %v537 = vpop.f32.mrf.mxu0
    %v538 = vadd.f32 %v525, %v537
    %v539 = vpop.f32.mrf.mxu0
    %540 = vdwg.mxu0
    %541 = vmatpush.bf16.xpose.msra.mxu0 %v385
    %542 = vmatpush.bf16.xpose.msra.mxu0 %v377
    %543 = vmatpush.bf16.xpose.msra.mxu0 %v369
    %544 = vmatpush.bf16.xpose.msra.mxu0 %v361
    %545 = vmatpush.bf16.xpose.msra.mxu0 %v353
    %546 = vmatpush.bf16.xpose.msra.mxu0 %v345
    %547 = vmatpush.bf16.xpose.msra.mxu0 %v337
    %548 = vmatpush.bf16.xpose.msra.mxu0 %v329
    %549 = vmatmul.bf16.gmra.mxu0 %v61
    %v550 = vpop.f32.mrf.mxu0
    %v551 = vadd.f32 %v538, %v550
    %v552 = vpop.f32.mrf.mxu0
    %553 = vdwg.mxu0
    %554 = vst [vmem:[#allocation5] sm:$0x3] %v551
    // Predicated region
    $region18: #{linear_forward.1} parent=1 // pred_check
      _
    $region19: #{linear_forward.1} parent=1 // pred_check_branch
      %556 = sbr.rel (0) target = $region21
    $region20: #{linear_forward.1} parent=1 // pred_region
      %558 = vsyncadd [#allocation4], 0
      %s560 = sshll.u32 [#allocation5], 4
      %s561 = int_to_ptr.vmem [resolvable:$true] %s560
      %s562 = sshll.u32 %s3, 4
      %s563 = int_to_ptr.hbm [resolvable:$true] %s562
      %565 = dma.vmem_to_hbm [thread:$0]  %s561, 32, %s563, [#allocation4]
    $region21: #{linear_forward.1} parent=1 // pred_fallthru
      _
    // Predicated region
    $region22: #{linear_forward.1} parent=1 // pred_check
      _
    $region23: #{linear_forward.1} parent=1 // pred_check_branch
      %567 = sbr.rel (0) target = $region25
    $region24: #{linear_forward.1} parent=1 // pred_region
      %569 = dma.done [#allocation4], 32
    $region25: #{linear_forward.1} parent=1 // pred_fallthru
      _
    %570 = vsyncpa [#allocation3], 1
    %571 = vsyncpa [#allocation4], 1

</llo_original>
